<compile_context>
chip_gen: v7x
topology: tpu7x:2x2x1
jax: 0.10.0
libtpu: 0.0.40
codegen_flags: <defaults>
</compile_context>

<pallas_src>
import jax
import jax.numpy as jnp
from jax import lax
from jax.experimental import pallas as pl
from jax.experimental.pallas import tpu as pltpu

BATCH = 1
INPUT_SIZE = 4
HIDDEN_SIZE = 4 * INPUT_SIZE   # 16
SEQ_LEN = 8
OUT_LANES = 128                # pad the 1-wide Linear output to a full lane tile


def lstm_kernel(x_ref, wih_ref, whh_ref, b_ref, h0_ref, c0_ref, pw_ref, pb_ref,
                out_ref):
    """Single-grid-point kernel: full unrolled LSTM recurrence + final Linear.

    x_ref  : (S, I)          input sequence
    wih_ref: (I, 4H)         W_ih^T   (PyTorch gate order i, f, g, o)
    whh_ref: (H, 4H)         W_hh^T
    b_ref  : (1, 4H)         b_ih + b_hh
    h0_ref : (1, H)          initial hidden state
    c0_ref : (1, H)          initial cell state
    pw_ref : (H, OUT_LANES)  predict.weight^T padded to 128 lanes (col 0 real)
    pb_ref : (1, 1)          predict.bias (SMEM scalar)
    out_ref: (S, OUT_LANES)  padded output (column 0 is the real output)
    """
    H = HIDDEN_SIZE
    S = out_ref.shape[0]          # static (= SEQ_LEN)

    # Input contribution for every timestep at once (one MXU pass).
    # (S, 4H) f32 = 8 x 64: register-resident, no VMEM scratch round-trip.
    xg = (jnp.dot(x_ref[...], wih_ref[...], preferred_element_type=jnp.float32)
          + b_ref[...])

    whh = whh_ref[...]            # (H, 4H) loaded once, reused every step
    h = h0_ref[...]               # (1, H)
    c = c0_ref[...]               # (1, H)

    hs = []
    # Fully unrolled recurrence (S = 8 steps on the serial critical path).
    for t in range(S):
        g = xg[t:t + 1, :] + jnp.dot(
            h, whh, preferred_element_type=jnp.float32)        # (1, 4H)
        # Two wide EUP pushes instead of four narrow per-gate activations.
        sg = jax.nn.sigmoid(g)
        tg = jnp.tanh(g)
        i_gate = sg[:, 0:H]
        f_gate = sg[:, H:2 * H]
        o_gate = sg[:, 3 * H:4 * H]
        g_gate = tg[:, 2 * H:3 * H]
        c = f_gate * c + i_gate * g_gate
        h = o_gate * jnp.tanh(c)
        hs.append(h)

    hs_all = jnp.concatenate(hs, axis=0)     # (S, H), register-resident

    # Final Linear(H, 1) on all timesteps at once, padded to OUT_LANES columns
    # so the store is a single unmasked lane-dense (8, 128) vst.
    out_ref[...] = (
        jnp.dot(hs_all, pw_ref[...], preferred_element_type=jnp.float32)
        + pb_ref[0, 0]
    )


def lstm101_forward(x, params):
    """x: (B, S, I) with B == 1.  Returns (B, S, 1)."""
    B, S, I = x.shape
    assert B == BATCH and I == INPUT_SIZE

    x2d = x.reshape(S, I)

    vmem = pl.BlockSpec(memory_space=pltpu.MemorySpace.VMEM)
    smem = pl.BlockSpec(memory_space=pltpu.MemorySpace.SMEM)

    out_pad = pl.pallas_call(
        lstm_kernel,
        out_shape=jax.ShapeDtypeStruct((S, OUT_LANES), jnp.float32),
        in_specs=[vmem,   # x          (S, I)
                  vmem,   # W_ih^T     (I, 4H)
                  vmem,   # W_hh^T     (H, 4H)
                  vmem,   # bias       (1, 4H)
                  vmem,   # h0         (1, H)
                  vmem,   # c0         (1, H)
                  vmem,   # pw padded  (H, OUT_LANES)
                  smem],  # pb scalar  (1, 1)
        out_specs=pl.BlockSpec(memory_space=pltpu.MemorySpace.VMEM),
    )(
        x2d,
        params["wih_t"],
        params["whh_t"],
        params["bias"],
        params["h0"],
        params["c0"],
        params["pw_pad"],
        params["pb"],
    )
    # Column 0 holds the real Linear(H, 1) output.
    return out_pad[:, 0:1].reshape(B, S, 1)


def make_params(key):
    """Deterministic parameter init mirroring the PyTorch module's shapes."""
    H, I = HIDDEN_SIZE, INPUT_SIZE
    k = 1.0 / jnp.sqrt(H)
    keys = jax.random.split(key, 8)
    wih = jax.random.uniform(keys[0], (4 * H, I), jnp.float32, -k, k)   # weight_ih_l0
    whh = jax.random.uniform(keys[1], (4 * H, H), jnp.float32, -k, k)   # weight_hh_l0
    bih = jax.random.uniform(keys[2], (4 * H,), jnp.float32, -k, k)     # bias_ih_l0
    bhh = jax.random.uniform(keys[3], (4 * H,), jnp.float32, -k, k)     # bias_hh_l0
    # self.hidden = (h1, c1): h1 xavier_uniform, c1 zeros
    bound_h = jnp.sqrt(6.0 / (BATCH + H))
    h0 = jax.random.uniform(keys[4], (BATCH, H), jnp.float32, -bound_h, bound_h)
    c0 = jnp.zeros((BATCH, H), jnp.float32)
    # predict = nn.Linear(H, 1)
    kp = 1.0 / jnp.sqrt(H)
    pw = jax.random.uniform(keys[5], (1, H), jnp.float32, -kp, kp)
    pb = jax.random.uniform(keys[6], (1,), jnp.float32, -kp, kp)

    pw_t = pw.T                                            # (H, 1)
    pw_pad = jnp.pad(pw_t, ((0, 0), (0, OUT_LANES - 1)))   # (H, 128), col 0 real

    return {
        "wih_t": wih.T,                        # (I, 4H)
        "whh_t": whh.T,                        # (H, 4H)
        "bias": (bih + bhh).reshape(1, 4 * H),
        "h0": h0,
        "c0": c0,
        "pw_t": pw_t,                          # (H, 1) — reference only
        "pw_pad": pw_pad,                      # (H, 128) — kernel input
        "pb": pb.reshape(1, 1),
    }


def reference_forward(x, params):
    """Pure-JAX reference of the same math (PyTorch LSTM semantics)."""
    H = HIDDEN_SIZE
    x2d = x.reshape(x.shape[1], x.shape[2])          # (S, I)
    xg = x2d @ params["wih_t"] + params["bias"]      # (S, 4H)

    def step(carry, g_x):
        h, c = carry
        g = g_x[None, :] + h @ params["whh_t"]
        i = jax.nn.sigmoid(g[:, 0:H])
        f = jax.nn.sigmoid(g[:, H:2 * H])
        gg = jnp.tanh(g[:, 2 * H:3 * H])
        o = jax.nn.sigmoid(g[:, 3 * H:4 * H])
        c = f * c + i * gg
        h = o * jnp.tanh(c)
        return (h, c), h[0]

    (_, _), hs = lax.scan(step, (params["h0"], params["c0"]), xg)
    out = hs @ params["pw_t"] + params["pb"]
    return out.reshape(x.shape[0], x.shape[1], 1)


if __name__ == "__main__":
    key = jax.random.PRNGKey(0)
    pkey, xkey = jax.random.split(key)
    params = make_params(pkey)
    x = jax.random.normal(xkey, (BATCH, SEQ_LEN, INPUT_SIZE), jnp.float32)

    out = lstm101_forward(x, params)
    out = jax.block_until_ready(out)

    ref = reference_forward(x, params)
    assert out.shape == (BATCH, SEQ_LEN, 1)
    assert jnp.allclose(out, ref, atol=1e-5, rtol=1e-5)

    print("KERNEL_OK")
</pallas_src>

<mosaic_0001>
module attributes {stable_mosaic.version = 11 : i64} {
  func.func @lstm_kernel(%arg0: memref<8x4xf32, #tpu.memory_space<vmem>>, %arg1: memref<4x64xf32, #tpu.memory_space<vmem>>, %arg2: memref<16x64xf32, #tpu.memory_space<vmem>>, %arg3: memref<1x64xf32, #tpu.memory_space<vmem>>, %arg4: memref<1x16xf32, #tpu.memory_space<vmem>>, %arg5: memref<1x16xf32, #tpu.memory_space<vmem>>, %arg6: memref<16x128xf32, #tpu.memory_space<vmem>>, %arg7: memref<1x1xf32, #tpu.memory_space<smem>>, %arg8: memref<8x128xf32, #tpu.memory_space<vmem>>) attributes {dimension_semantics = [], scalar_prefetch = 0 : i64, scratch_operands = 0 : i64, tpu.core_type = #tpu.core_type<tc>} {
    %c0 = arith.constant 0 : index
    %c0_0 = arith.constant 0 : index
    %0 = vector.load %arg0[%c0, %c0_0] : memref<8x4xf32, #tpu.memory_space<vmem>>, vector<8x4xf32>
    %c0_1 = arith.constant 0 : index
    %c0_2 = arith.constant 0 : index
    %1 = vector.load %arg1[%c0_1, %c0_2] : memref<4x64xf32, #tpu.memory_space<vmem>>, vector<4x64xf32>
    %cst = arith.constant dense<0.000000e+00> : vector<8x64xf32>
    %2 = tpu.matmul %0, %1, %cst {dimension_numbers = #tpu.dot_dimension_numbers<[1], [0], [0], [1], [0, 0, 1, 1], [], []>} : vector<8x4xf32>, vector<4x64xf32>, vector<8x64xf32> -> vector<8x64xf32>
    %c0_3 = arith.constant 0 : index
    %c0_4 = arith.constant 0 : index
    %3 = vector.load %arg3[%c0_3, %c0_4] : memref<1x64xf32, #tpu.memory_space<vmem>>, vector<1x64xf32>
    %4 = vector.broadcast %3 : vector<1x64xf32> to vector<8x64xf32>
    %5 = arith.addf %2, %4 : vector<8x64xf32>
    %c0_5 = arith.constant 0 : index
    %c0_6 = arith.constant 0 : index
    %6 = vector.load %arg2[%c0_5, %c0_6] : memref<16x64xf32, #tpu.memory_space<vmem>>, vector<16x64xf32>
    %c0_7 = arith.constant 0 : index
    %c0_8 = arith.constant 0 : index
    %7 = vector.load %arg4[%c0_7, %c0_8] : memref<1x16xf32, #tpu.memory_space<vmem>>, vector<1x16xf32>
    %c0_9 = arith.constant 0 : index
    %c0_10 = arith.constant 0 : index
    %8 = vector.load %arg5[%c0_9, %c0_10] : memref<1x16xf32, #tpu.memory_space<vmem>>, vector<1x16xf32>
    %9 = vector.extract_strided_slice %5 {offsets = [0, 0], sizes = [1, 64], strides = [1, 1]} : vector<8x64xf32> to vector<1x64xf32>
    %cst_11 = arith.constant dense<0.000000e+00> : vector<1x64xf32>
    %10 = tpu.matmul %7, %6, %cst_11 {dimension_numbers = #tpu.dot_dimension_numbers<[1], [0], [0], [1], [0, 0, 1, 1], [], []>} : vector<1x16xf32>, vector<16x64xf32>, vector<1x64xf32> -> vector<1x64xf32>
    %11 = arith.addf %9, %10 : vector<1x64xf32>
    %12 = arith.negf %11 : vector<1x64xf32>
    %13 = math.exp %12 : vector<1x64xf32>
    %cst_12 = arith.constant 1.000000e+00 : f32
    %14 = vector.broadcast %cst_12 : f32 to vector<1x64xf32>
    %15 = arith.addf %14, %13 : vector<1x64xf32>
    %16 = arith.divf %14, %15 : vector<1x64xf32>
    %17 = math.tanh %11 : vector<1x64xf32>
    %18 = vector.extract_strided_slice %16 {offsets = [0, 0], sizes = [1, 16], strides = [1, 1]} : vector<1x64xf32> to vector<1x16xf32>
    %19 = vector.extract_strided_slice %16 {offsets = [0, 16], sizes = [1, 16], strides = [1, 1]} : vector<1x64xf32> to vector<1x16xf32>
    %20 = vector.extract_strided_slice %16 {offsets = [0, 48], sizes = [1, 16], strides = [1, 1]} : vector<1x64xf32> to vector<1x16xf32>
    %21 = vector.extract_strided_slice %17 {offsets = [0, 32], sizes = [1, 16], strides = [1, 1]} : vector<1x64xf32> to vector<1x16xf32>
    %22 = arith.mulf %19, %8 : vector<1x16xf32>
    %23 = arith.mulf %18, %21 : vector<1x16xf32>
    %24 = arith.addf %22, %23 : vector<1x16xf32>
    %25 = math.tanh %24 : vector<1x16xf32>
    %26 = arith.mulf %20, %25 : vector<1x16xf32>
    %27 = vector.extract_strided_slice %5 {offsets = [1, 0], sizes = [1, 64], strides = [1, 1]} : vector<8x64xf32> to vector<1x64xf32>
    %cst_13 = arith.constant dense<0.000000e+00> : vector<1x64xf32>
    %28 = tpu.matmul %26, %6, %cst_13 {dimension_numbers = #tpu.dot_dimension_numbers<[1], [0], [0], [1], [0, 0, 1, 1], [], []>} : vector<1x16xf32>, vector<16x64xf32>, vector<1x64xf32> -> vector<1x64xf32>
    %29 = arith.addf %27, %28 : vector<1x64xf32>
    %30 = arith.negf %29 : vector<1x64xf32>
    %31 = math.exp %30 : vector<1x64xf32>
    %cst_14 = arith.constant 1.000000e+00 : f32
    %32 = vector.broadcast %cst_14 : f32 to vector<1x64xf32>
    %33 = arith.addf %32, %31 : vector<1x64xf32>
    %34 = arith.divf %32, %33 : vector<1x64xf32>
    %35 = math.tanh %29 : vector<1x64xf32>
    %36 = vector.extract_strided_slice %34 {offsets = [0, 0], sizes = [1, 16], strides = [1, 1]} : vector<1x64xf32> to vector<1x16xf32>
    %37 = vector.extract_strided_slice %34 {offsets = [0, 16], sizes = [1, 16], strides = [1, 1]} : vector<1x64xf32> to vector<1x16xf32>
    %38 = vector.extract_strided_slice %34 {offsets = [0, 48], sizes = [1, 16], strides = [1, 1]} : vector<1x64xf32> to vector<1x16xf32>
    %39 = vector.extract_strided_slice %35 {offsets = [0, 32], sizes = [1, 16], strides = [1, 1]} : vector<1x64xf32> to vector<1x16xf32>
    %40 = arith.mulf %37, %24 : vector<1x16xf32>
    %41 = arith.mulf %36, %39 : vector<1x16xf32>
    %42 = arith.addf %40, %41 : vector<1x16xf32>
    %43 = math.tanh %42 : vector<1x16xf32>
    %44 = arith.mulf %38, %43 : vector<1x16xf32>
    %45 = vector.extract_strided_slice %5 {offsets = [2, 0], sizes = [1, 64], strides = [1, 1]} : vector<8x64xf32> to vector<1x64xf32>
    %cst_15 = arith.constant dense<0.000000e+00> : vector<1x64xf32>
    %46 = tpu.matmul %44, %6, %cst_15 {dimension_numbers = #tpu.dot_dimension_numbers<[1], [0], [0], [1], [0, 0, 1, 1], [], []>} : vector<1x16xf32>, vector<16x64xf32>, vector<1x64xf32> -> vector<1x64xf32>
    %47 = arith.addf %45, %46 : vector<1x64xf32>
    %48 = arith.negf %47 : vector<1x64xf32>
    %49 = math.exp %48 : vector<1x64xf32>
    %cst_16 = arith.constant 1.000000e+00 : f32
    %50 = vector.broadcast %cst_16 : f32 to vector<1x64xf32>
    %51 = arith.addf %50, %49 : vector<1x64xf32>
    %52 = arith.divf %50, %51 : vector<1x64xf32>
    %53 = math.tanh %47 : vector<1x64xf32>
    %54 = vector.extract_strided_slice %52 {offsets = [0, 0], sizes = [1, 16], strides = [1, 1]} : vector<1x64xf32> to vector<1x16xf32>
    %55 = vector.extract_strided_slice %52 {offsets = [0, 16], sizes = [1, 16], strides = [1, 1]} : vector<1x64xf32> to vector<1x16xf32>
    %56 = vector.extract_strided_slice %52 {offsets = [0, 48], sizes = [1, 16], strides = [1, 1]} : vector<1x64xf32> to vector<1x16xf32>
    %57 = vector.extract_strided_slice %53 {offsets = [0, 32], sizes = [1, 16], strides = [1, 1]} : vector<1x64xf32> to vector<1x16xf32>
    %58 = arith.mulf %55, %42 : vector<1x16xf32>
    %59 = arith.mulf %54, %57 : vector<1x16xf32>
    %60 = arith.addf %58, %59 : vector<1x16xf32>
    %61 = math.tanh %60 : vector<1x16xf32>
    %62 = arith.mulf %56, %61 : vector<1x16xf32>
    %63 = vector.extract_strided_slice %5 {offsets = [3, 0], sizes = [1, 64], strides = [1, 1]} : vector<8x64xf32> to vector<1x64xf32>
    %cst_17 = arith.constant dense<0.000000e+00> : vector<1x64xf32>
    %64 = tpu.matmul %62, %6, %cst_17 {dimension_numbers = #tpu.dot_dimension_numbers<[1], [0], [0], [1], [0, 0, 1, 1], [], []>} : vector<1x16xf32>, vector<16x64xf32>, vector<1x64xf32> -> vector<1x64xf32>
    %65 = arith.addf %63, %64 : vector<1x64xf32>
    %66 = arith.negf %65 : vector<1x64xf32>
    %67 = math.exp %66 : vector<1x64xf32>
    %cst_18 = arith.constant 1.000000e+00 : f32
    %68 = vector.broadcast %cst_18 : f32 to vector<1x64xf32>
    %69 = arith.addf %68, %67 : vector<1x64xf32>
    %70 = arith.divf %68, %69 : vector<1x64xf32>
    %71 = math.tanh %65 : vector<1x64xf32>
    %72 = vector.extract_strided_slice %70 {offsets = [0, 0], sizes = [1, 16], strides = [1, 1]} : vector<1x64xf32> to vector<1x16xf32>
    %73 = vector.extract_strided_slice %70 {offsets = [0, 16], sizes = [1, 16], strides = [1, 1]} : vector<1x64xf32> to vector<1x16xf32>
    %74 = vector.extract_strided_slice %70 {offsets = [0, 48], sizes = [1, 16], strides = [1, 1]} : vector<1x64xf32> to vector<1x16xf32>
    %75 = vector.extract_strided_slice %71 {offsets = [0, 32], sizes = [1, 16], strides = [1, 1]} : vector<1x64xf32> to vector<1x16xf32>
    %76 = arith.mulf %73, %60 : vector<1x16xf32>
    %77 = arith.mulf %72, %75 : vector<1x16xf32>
    %78 = arith.addf %76, %77 : vector<1x16xf32>
    %79 = math.tanh %78 : vector<1x16xf32>
    %80 = arith.mulf %74, %79 : vector<1x16xf32>
    %81 = vector.extract_strided_slice %5 {offsets = [4, 0], sizes = [1, 64], strides = [1, 1]} : vector<8x64xf32> to vector<1x64xf32>
    %cst_19 = arith.constant dense<0.000000e+00> : vector<1x64xf32>
    %82 = tpu.matmul %80, %6, %cst_19 {dimension_numbers = #tpu.dot_dimension_numbers<[1], [0], [0], [1], [0, 0, 1, 1], [], []>} : vector<1x16xf32>, vector<16x64xf32>, vector<1x64xf32> -> vector<1x64xf32>
    %83 = arith.addf %81, %82 : vector<1x64xf32>
    %84 = arith.negf %83 : vector<1x64xf32>
    %85 = math.exp %84 : vector<1x64xf32>
    %cst_20 = arith.constant 1.000000e+00 : f32
    %86 = vector.broadcast %cst_20 : f32 to vector<1x64xf32>
    %87 = arith.addf %86, %85 : vector<1x64xf32>
    %88 = arith.divf %86, %87 : vector<1x64xf32>
    %89 = math.tanh %83 : vector<1x64xf32>
    %90 = vector.extract_strided_slice %88 {offsets = [0, 0], sizes = [1, 16], strides = [1, 1]} : vector<1x64xf32> to vector<1x16xf32>
    %91 = vector.extract_strided_slice %88 {offsets = [0, 16], sizes = [1, 16], strides = [1, 1]} : vector<1x64xf32> to vector<1x16xf32>
    %92 = vector.extract_strided_slice %88 {offsets = [0, 48], sizes = [1, 16], strides = [1, 1]} : vector<1x64xf32> to vector<1x16xf32>
    %93 = vector.extract_strided_slice %89 {offsets = [0, 32], sizes = [1, 16], strides = [1, 1]} : vector<1x64xf32> to vector<1x16xf32>
    %94 = arith.mulf %91, %78 : vector<1x16xf32>
    %95 = arith.mulf %90, %93 : vector<1x16xf32>
    %96 = arith.addf %94, %95 : vector<1x16xf32>
    %97 = math.tanh %96 : vector<1x16xf32>
    %98 = arith.mulf %92, %97 : vector<1x16xf32>
    %99 = vector.extract_strided_slice %5 {offsets = [5, 0], sizes = [1, 64], strides = [1, 1]} : vector<8x64xf32> to vector<1x64xf32>
    %cst_21 = arith.constant dense<0.000000e+00> : vector<1x64xf32>
    %100 = tpu.matmul %98, %6, %cst_21 {dimension_numbers = #tpu.dot_dimension_numbers<[1], [0], [0], [1], [0, 0, 1, 1], [], []>} : vector<1x16xf32>, vector<16x64xf32>, vector<1x64xf32> -> vector<1x64xf32>
    %101 = arith.addf %99, %100 : vector<1x64xf32>
    %102 = arith.negf %101 : vector<1x64xf32>
    %103 = math.exp %102 : vector<1x64xf32>
    %cst_22 = arith.constant 1.000000e+00 : f32
    %104 = vector.broadcast %cst_22 : f32 to vector<1x64xf32>
    %105 = arith.addf %104, %103 : vector<1x64xf32>
    %106 = arith.divf %104, %105 : vector<1x64xf32>
    %107 = math.tanh %101 : vector<1x64xf32>
    %108 = vector.extract_strided_slice %106 {offsets = [0, 0], sizes = [1, 16], strides = [1, 1]} : vector<1x64xf32> to vector<1x16xf32>
    %109 = vector.extract_strided_slice %106 {offsets = [0, 16], sizes = [1, 16], strides = [1, 1]} : vector<1x64xf32> to vector<1x16xf32>
    %110 = vector.extract_strided_slice %106 {offsets = [0, 48], sizes = [1, 16], strides = [1, 1]} : vector<1x64xf32> to vector<1x16xf32>
    %111 = vector.extract_strided_slice %107 {offsets = [0, 32], sizes = [1, 16], strides = [1, 1]} : vector<1x64xf32> to vector<1x16xf32>
    %112 = arith.mulf %109, %96 : vector<1x16xf32>
    %113 = arith.mulf %108, %111 : vector<1x16xf32>
    %114 = arith.addf %112, %113 : vector<1x16xf32>
    %115 = math.tanh %114 : vector<1x16xf32>
    %116 = arith.mulf %110, %115 : vector<1x16xf32>
    %117 = vector.extract_strided_slice %5 {offsets = [6, 0], sizes = [1, 64], strides = [1, 1]} : vector<8x64xf32> to vector<1x64xf32>
    %cst_23 = arith.constant dense<0.000000e+00> : vector<1x64xf32>
    %118 = tpu.matmul %116, %6, %cst_23 {dimension_numbers = #tpu.dot_dimension_numbers<[1], [0], [0], [1], [0, 0, 1, 1], [], []>} : vector<1x16xf32>, vector<16x64xf32>, vector<1x64xf32> -> vector<1x64xf32>
    %119 = arith.addf %117, %118 : vector<1x64xf32>
    %120 = arith.negf %119 : vector<1x64xf32>
    %121 = math.exp %120 : vector<1x64xf32>
    %cst_24 = arith.constant 1.000000e+00 : f32
    %122 = vector.broadcast %cst_24 : f32 to vector<1x64xf32>
    %123 = arith.addf %122, %121 : vector<1x64xf32>
    %124 = arith.divf %122, %123 : vector<1x64xf32>
    %125 = math.tanh %119 : vector<1x64xf32>
    %126 = vector.extract_strided_slice %124 {offsets = [0, 0], sizes = [1, 16], strides = [1, 1]} : vector<1x64xf32> to vector<1x16xf32>
    %127 = vector.extract_strided_slice %124 {offsets = [0, 16], sizes = [1, 16], strides = [1, 1]} : vector<1x64xf32> to vector<1x16xf32>
    %128 = vector.extract_strided_slice %124 {offsets = [0, 48], sizes = [1, 16], strides = [1, 1]} : vector<1x64xf32> to vector<1x16xf32>
    %129 = vector.extract_strided_slice %125 {offsets = [0, 32], sizes = [1, 16], strides = [1, 1]} : vector<1x64xf32> to vector<1x16xf32>
    %130 = arith.mulf %127, %114 : vector<1x16xf32>
    %131 = arith.mulf %126, %129 : vector<1x16xf32>
    %132 = arith.addf %130, %131 : vector<1x16xf32>
    %133 = math.tanh %132 : vector<1x16xf32>
    %134 = arith.mulf %128, %133 : vector<1x16xf32>
    %135 = vector.extract_strided_slice %5 {offsets = [7, 0], sizes = [1, 64], strides = [1, 1]} : vector<8x64xf32> to vector<1x64xf32>
    %cst_25 = arith.constant dense<0.000000e+00> : vector<1x64xf32>
    %136 = tpu.matmul %134, %6, %cst_25 {dimension_numbers = #tpu.dot_dimension_numbers<[1], [0], [0], [1], [0, 0, 1, 1], [], []>} : vector<1x16xf32>, vector<16x64xf32>, vector<1x64xf32> -> vector<1x64xf32>
    %137 = arith.addf %135, %136 : vector<1x64xf32>
    %138 = arith.negf %137 : vector<1x64xf32>
    %139 = math.exp %138 : vector<1x64xf32>
    %cst_26 = arith.constant 1.000000e+00 : f32
    %140 = vector.broadcast %cst_26 : f32 to vector<1x64xf32>
    %141 = arith.addf %140, %139 : vector<1x64xf32>
    %142 = arith.divf %140, %141 : vector<1x64xf32>
    %143 = math.tanh %137 : vector<1x64xf32>
    %144 = vector.extract_strided_slice %142 {offsets = [0, 0], sizes = [1, 16], strides = [1, 1]} : vector<1x64xf32> to vector<1x16xf32>
    %145 = vector.extract_strided_slice %142 {offsets = [0, 16], sizes = [1, 16], strides = [1, 1]} : vector<1x64xf32> to vector<1x16xf32>
    %146 = vector.extract_strided_slice %142 {offsets = [0, 48], sizes = [1, 16], strides = [1, 1]} : vector<1x64xf32> to vector<1x16xf32>
    %147 = vector.extract_strided_slice %143 {offsets = [0, 32], sizes = [1, 16], strides = [1, 1]} : vector<1x64xf32> to vector<1x16xf32>
    %148 = arith.mulf %145, %132 : vector<1x16xf32>
    %149 = arith.mulf %144, %147 : vector<1x16xf32>
    %150 = arith.addf %148, %149 : vector<1x16xf32>
    %151 = math.tanh %150 : vector<1x16xf32>
    %152 = arith.mulf %146, %151 : vector<1x16xf32>
    %153 = tpu.concatenate %26, %44, %62, %80, %98, %116, %134, %152 in 0 : vector<1x16xf32>, vector<1x16xf32>, vector<1x16xf32>, vector<1x16xf32>, vector<1x16xf32>, vector<1x16xf32>, vector<1x16xf32>, vector<1x16xf32> -> vector<8x16xf32>
    %c0_27 = arith.constant 0 : index
    %c0_28 = arith.constant 0 : index
    %154 = vector.load %arg6[%c0_27, %c0_28] : memref<16x128xf32, #tpu.memory_space<vmem>>, vector<16x128xf32>
    %cst_29 = arith.constant dense<0.000000e+00> : vector<8x128xf32>
    %155 = tpu.matmul %153, %154, %cst_29 {dimension_numbers = #tpu.dot_dimension_numbers<[1], [0], [0], [1], [0, 0, 1, 1], [], []>} : vector<8x16xf32>, vector<16x128xf32>, vector<8x128xf32> -> vector<8x128xf32>
    %c0_30 = arith.constant 0 : index
    %c0_31 = arith.constant 0 : index
    %156 = memref.load %arg7[%c0_30, %c0_31] : memref<1x1xf32, #tpu.memory_space<smem>>
    %157 = vector.broadcast %156 : f32 to vector<8x128xf32>
    %158 = arith.addf %155, %157 : vector<8x128xf32>
    %c0_32 = arith.constant 0 : index
    %c0_33 = arith.constant 0 : index
    %159 = vector.load %arg8[%c0_32, %c0_33] : memref<8x128xf32, #tpu.memory_space<vmem>>, vector<8x128xf32>
    tpu.vector_store %arg8[%c0_32, %c0_33], %158 {strides = array<i32>} : memref<8x128xf32, #tpu.memory_space<vmem>>, vector<8x128xf32>,
    return
  }
}

</mosaic_0001>

<llo_original>
// kernel: tpu_custom_call.1
$region0: #{tpu_custom_call.1}
  #allocation0 [shape = 'u32[]', space=smem, size = 0x4, offset = 0x4, fixed_abs, tag = 'smem constant byte address 0x4 - core index']
  #allocation1 [shape = 'u32[144,128]{1,0:T(1,128)}', space=vmem, size = 0x12000, scoped, tag = 'internal scratch']
  #allocation2 [shape = 'f32[1,1]{1,0:T(1,128)S(6)}', space=smem, size = 0x200, scoped, tag = 'scoped memory for tpu_custom_call.1']
  %s0 = inlined_call_operand.vmem [shape: f32[8,4], index: 0, kind: input, shape index: {}]
  %s1 = inlined_call_operand.hbm [shape: f32[4,64], index: 1, kind: input, shape index: {}]
  %s2 = inlined_call_operand.vmem [shape: f32[16,64], index: 2, kind: input, shape index: {}]
  %s3 = inlined_call_operand.vmem [shape: f32[1,64], index: 3, kind: input, shape index: {}]
  %s4 = inlined_call_operand.vmem [shape: f32[1,16], index: 4, kind: input, shape index: {}]
  %s5 = inlined_call_operand.hbm [shape: f32[1,16], index: 5, kind: input, shape index: {}]
  %s6 = inlined_call_operand.vmem [shape: f32[16,128], index: 6, kind: input, shape index: {}]
  %s7 = inlined_call_operand.<no memory space> [shape: f32[1,1], index: 7, kind: input, shape index: {}]
  %s8 = inlined_call_operand.hbm [shape: f32[8,128], index: 8, kind: output, shape index: {}]
  %s9 = sld [smem:[#allocation0]]
  $region50: #{tpu_custom_call.1} parent=0
    _
  %s11 = ssub.s32 1, %s9
  %s12 = scalar_select 0, %s11, %s9
  %13 = sst [smem:[#allocation2]] %s7
  $region1: #{tpu_custom_call.1} parent=0
    #allocation3 [shape = 'u8[2048]{0}', space=vmem, size = 0x800, scoped, tag = 'input window, operand 1, single buffered']
    #allocation4 [shape = 's32[1]{0}', space=sflag, size = 0x4, scoped, tag = 'scoped memory for tpu_custom_call.1']
    #allocation5 [shape = 's32[1]{0}', space=sflag, size = 0x4, scoped, tag = 'scoped memory for tpu_custom_call.1']
    #allocation6 [shape = 'u8[512]{0}', space=vmem, size = 0x400, scoped, tag = 'input window, operand 5, single buffered']
    #allocation7 [shape = 's32[1]{0}', space=sflag, size = 0x4, scoped, tag = 'scoped memory for tpu_custom_call.1']
    #allocation8 [shape = 'u8[4096]{0}', space=vmem, size = 0x1000, scoped, tag = 'output window, operand 0, single buffered']
    %14 = vsyncpa [#allocation4], 0
    %15 = vsyncpa [#allocation7], 0
    %16 = vsyncpa [#allocation5], 0
    // Predicated region
    $region2: #{tpu_custom_call.1} parent=1 // pred_check
      _
    $region3: #{tpu_custom_call.1} parent=1 // pred_check_branch
      %18 = sbr.rel (0) target = $region5
    $region4: #{tpu_custom_call.1} parent=1 // pred_region
      _
    $region5: #{tpu_custom_call.1} parent=1 // pred_fallthru
      _
    // Predicated region
    $region6: #{tpu_custom_call.1} parent=1 // pred_check
      _
    $region7: #{tpu_custom_call.1} parent=1 // pred_check_branch
      %20 = sbr.rel (0) target = $region9
    $region8: #{tpu_custom_call.1} parent=1 // pred_region
      %s22 = ssub.s32 64, 64
      %23 = vsyncadd [#allocation4], %s22
      %s25 = sshll.u32 [#allocation3], 4
      %s26 = int_to_ptr.vmem [resolvable:$true] %s25
      %28 = dma.hbm_to_vmem [thread:$0]  %s1, 64, %s26, [#allocation4]
    $region9: #{tpu_custom_call.1} parent=1 // pred_fallthru
      _
    // Predicated region
    $region10: #{tpu_custom_call.1} parent=1 // pred_check
      _
    $region11: #{tpu_custom_call.1} parent=1 // pred_check_branch
      %30 = sbr.rel (0) target = $region13
    $region12: #{tpu_custom_call.1} parent=1 // pred_region
      _
    $region13: #{tpu_custom_call.1} parent=1 // pred_fallthru
      _
    // Predicated region
    $region14: #{tpu_custom_call.1} parent=1 // pred_check
      _
    $region15: #{tpu_custom_call.1} parent=1 // pred_check_branch
      %32 = sbr.rel (0) target = $region17
    $region16: #{tpu_custom_call.1} parent=1 // pred_region
      _
    $region17: #{tpu_custom_call.1} parent=1 // pred_fallthru
      _
    // Predicated region
    $region18: #{tpu_custom_call.1} parent=1 // pred_check
      _
    $region19: #{tpu_custom_call.1} parent=1 // pred_check_branch
      %34 = sbr.rel (0) target = $region21
    $region20: #{tpu_custom_call.1} parent=1 // pred_region
      _
    $region21: #{tpu_custom_call.1} parent=1 // pred_fallthru
      _
    // Predicated region
    $region22: #{tpu_custom_call.1} parent=1 // pred_check
      _
    $region23: #{tpu_custom_call.1} parent=1 // pred_check_branch
      %36 = sbr.rel (0) target = $region25
    $region24: #{tpu_custom_call.1} parent=1 // pred_region
      %s38 = ssub.s32 16, 16
      %39 = vsyncadd [#allocation7], %s38
      %s41 = sshll.u32 [#allocation6], 4
      %s42 = int_to_ptr.vmem [resolvable:$true] %s41
      %44 = dma.hbm_to_vmem [thread:$0]  %s5, 16, %s42, [#allocation7]
    $region25: #{tpu_custom_call.1} parent=1 // pred_fallthru
      _
    // Predicated region
    $region26: #{tpu_custom_call.1} parent=1 // pred_check
      _
    $region27: #{tpu_custom_call.1} parent=1 // pred_check_branch
      %46 = sbr.rel (0) target = $region29
    $region28: #{tpu_custom_call.1} parent=1 // pred_region
      _
    $region29: #{tpu_custom_call.1} parent=1 // pred_fallthru
      _
    // Predicated region
    $region30: #{tpu_custom_call.1} parent=1 // pred_check
      _
    $region31: #{tpu_custom_call.1} parent=1 // pred_check_branch
      %48 = sbr.rel (0) target = $region33
    $region32: #{tpu_custom_call.1} parent=1 // pred_region
      _
    $region33: #{tpu_custom_call.1} parent=1 // pred_fallthru
      _
    // Predicated region
    $region34: #{tpu_custom_call.1} parent=1 // pred_check
      _
    $region35: #{tpu_custom_call.1} parent=1 // pred_check_branch
      %50 = sbr.rel (0) target = $region37
    $region36: #{tpu_custom_call.1} parent=1 // pred_region
      %51 = dma.done [#allocation4], 64
    $region37: #{tpu_custom_call.1} parent=1 // pred_fallthru
      _
    // Predicated region
    $region38: #{tpu_custom_call.1} parent=1 // pred_check
      _
    $region39: #{tpu_custom_call.1} parent=1 // pred_check_branch
      %53 = sbr.rel (0) target = $region41
    $region40: #{tpu_custom_call.1} parent=1 // pred_region
      %54 = dma.done [#allocation7], 16
    $region41: #{tpu_custom_call.1} parent=1 // pred_fallthru
      _
    %v55 = vld [vmem:[%s0] sm:$0xff]
    %v56 = vld [vmem:[#allocation3] sm:$0xf]
    %v57 = vld [vmem:[%s3] sm:$0x1]
    %v59 = vlaneseq
    %v60 = vshrl.u32 %v59, 7
    %v61 = vsub.s32 0, %v60
    %v62 = vrot.slane %v57, %v61
    %vm64 = vcmask 31744
    %v66 = vsel %vm64, %v55, 0
    %vm68 = vcmask 1043456
    %v70 = vsel %vm68, %v56, 0
    %72 = vmatprep.subr.mxu0 0.0
    %73 = vmatpush1.msra.mxu0 %v70
    %74 = vmatprep.subr.mxu0 0.0
    %75 = vmatpush1.msra.mxu0 0.0
    %76 = vmatprep.subr.mxu0 0.0
    %77 = vmatpush1.msra.mxu0 0.0
    %78 = vmatprep.subr.mxu0 0.0
    %79 = vmatpush1.msra.mxu0 0.0
    %80 = vmatprep.subr.mxu0 0.0
    %81 = vmatpush1.msra.mxu0 0.0
    %82 = vmatprep.subr.mxu0 0.0
    %83 = vmatpush1.msra.mxu0 0.0
    %84 = vmatprep.subr.mxu0 0.0
    %85 = vmatpush1.msra.mxu0 0.0
    %86 = vmatprep.subr.mxu0 0.0
    %87 = vmatpush1.msra.mxu0 0.0
    %88 = vmatprep.subr.mxu0 0.0
    %89 = vmatpush1.msra.mxu0 0.0
    %90 = vmatprep.subr.mxu0 0.0
    %91 = vmatpush1.msra.mxu0 0.0
    %92 = vmatprep.subr.mxu0 0.0
    %93 = vmatpush1.msra.mxu0 0.0
    %94 = vmatprep.subr.mxu0 0.0
    %95 = vmatpush1.msra.mxu0 0.0
    %96 = vmatprep.subr.mxu0 0.0
    %97 = vmatpush1.msra.mxu0 0.0
    %98 = vmatprep.subr.mxu0 0.0
    %99 = vmatpush1.msra.mxu0 0.0
    %100 = vmatprep.subr.mxu0 0.0
    %101 = vmatpush1.msra.mxu0 0.0
    %102 = vmatprep.subr.mxu0 0.0
    %103 = vmatpush1.msra.mxu0 0.0
    %104 = vmatprep.subr.mxu0 0.0
    %105 = vmatpush1.msra.mxu0 0.0
    %106 = vmatprep.subr.mxu0 0.0
    %107 = vmatpush1.msra.mxu0 0.0
    %108 = vmatprep.subr.mxu0 0.0
    %109 = vmatpush1.msra.mxu0 0.0
    %110 = vmatprep.subr.mxu0 0.0
    %111 = vmatpush1.msra.mxu0 0.0
    %112 = vmatprep.subr.mxu0 0.0
    %113 = vmatpush1.msra.mxu0 0.0
    %114 = vmatprep.subr.mxu0 0.0
    %115 = vmatpush1.msra.mxu0 0.0
    %116 = vmatprep.subr.mxu0 0.0
    %117 = vmatpush1.msra.mxu0 0.0
    %118 = vmatprep.subr.mxu0 0.0
    %119 = vmatpush1.msra.mxu0 0.0
    %120 = vmatprep.subr.mxu0 0.0
    %121 = vmatpush1.msra.mxu0 0.0
    %122 = vmatprep.subr.mxu0 0.0
    %123 = vmatpush1.msra.mxu0 0.0
    %124 = vmatprep.subr.mxu0 0.0
    %125 = vmatpush1.msra.mxu0 0.0
    %126 = vmatprep.subr.mxu0 0.0
    %127 = vmatpush1.msra.mxu0 0.0
    %128 = vmatprep.subr.mxu0 0.0
    %129 = vmatpush1.msra.mxu0 0.0
    %130 = vmatprep.subr.mxu0 0.0
    %131 = vmatpush1.msra.mxu0 0.0
    %132 = vmatprep.subr.mxu0 0.0
    %133 = vmatpush1.msra.mxu0 0.0
    %134 = vmatprep.subr.mxu0 0.0
    %135 = vmatpush1.msra.mxu0 0.0
    %136 = vmatprep.mubr.f32.mxu0 0.0
    %137 = vmatmul.mubr.f32.gmra.mrb[0].mxu0 %v66
    %v138 = vpop.f32.mrb[0].mxu0
    %v139 = vadd.f32 %v62, %v138
    %v140 = vpop.f32.mrb[0].mxu0
    %141 = vdwg.mxu0
    %v142 = vld [vmem:[%s2] sm:$0xff]
    %v143 = vld [vmem:[%s2 + $0x8] sm:$0xff]
    %v144 = vld [vmem:[%s4] sm:$0x1]
    %v145 = vld [vmem:[#allocation6] sm:$0x1]
    %vm146 = vcmask 130048
    %v148 = vsel %vm146, %v144, 0
    %150 = vmatprep.subr.mxu0 0.0
    %151 = vmatpush1.msra.mxu0 %v142
    %152 = vmatprep.subr.mxu0 0.0
    %153 = vmatpush1.msra.mxu0 %v143
    %154 = vmatprep.subr.mxu0 0.0
    %155 = vmatpush1.msra.mxu0 0.0
    %156 = vmatprep.subr.mxu0 0.0
    %157 = vmatpush1.msra.mxu0 0.0
    %158 = vmatprep.subr.mxu0 0.0
    %159 = vmatpush1.msra.mxu0 0.0
    %160 = vmatprep.subr.mxu0 0.0
    %161 = vmatpush1.msra.mxu0 0.0
    %162 = vmatprep.subr.mxu0 0.0
    %163 = vmatpush1.msra.mxu0 0.0
    %164 = vmatprep.subr.mxu0 0.0
    %165 = vmatpush1.msra.mxu0 0.0
    %166 = vmatprep.subr.mxu0 0.0
    %167 = vmatpush1.msra.mxu0 0.0
    %168 = vmatprep.subr.mxu0 0.0
    %169 = vmatpush1.msra.mxu0 0.0
    %170 = vmatprep.subr.mxu0 0.0
    %171 = vmatpush1.msra.mxu0 0.0
    %172 = vmatprep.subr.mxu0 0.0
    %173 = vmatpush1.msra.mxu0 0.0
    %174 = vmatprep.subr.mxu0 0.0
    %175 = vmatpush1.msra.mxu0 0.0
    %176 = vmatprep.subr.mxu0 0.0
    %177 = vmatpush1.msra.mxu0 0.0
    %178 = vmatprep.subr.mxu0 0.0
    %179 = vmatpush1.msra.mxu0 0.0
    %180 = vmatprep.subr.mxu0 0.0
    %181 = vmatpush1.msra.mxu0 0.0
    %182 = vmatprep.subr.mxu0 0.0
    %183 = vmatpush1.msra.mxu0 0.0
    %184 = vmatprep.subr.mxu0 0.0
    %185 = vmatpush1.msra.mxu0 0.0
    %186 = vmatprep.subr.mxu0 0.0
    %187 = vmatpush1.msra.mxu0 0.0
    %188 = vmatprep.subr.mxu0 0.0
    %189 = vmatpush1.msra.mxu0 0.0
    %190 = vmatprep.subr.mxu0 0.0
    %191 = vmatpush1.msra.mxu0 0.0
    %192 = vmatprep.subr.mxu0 0.0
    %193 = vmatpush1.msra.mxu0 0.0
    %194 = vmatprep.subr.mxu0 0.0
    %195 = vmatpush1.msra.mxu0 0.0
    %196 = vmatprep.subr.mxu0 0.0
    %197 = vmatpush1.msra.mxu0 0.0
    %198 = vmatprep.subr.mxu0 0.0
    %199 = vmatpush1.msra.mxu0 0.0
    %200 = vmatprep.subr.mxu0 0.0
    %201 = vmatpush1.msra.mxu0 0.0
    %202 = vmatprep.subr.mxu0 0.0
    %203 = vmatpush1.msra.mxu0 0.0
    %204 = vmatprep.subr.mxu0 0.0
    %205 = vmatpush1.msra.mxu0 0.0
    %206 = vmatprep.subr.mxu0 0.0
    %207 = vmatpush1.msra.mxu0 0.0
    %208 = vmatprep.subr.mxu0 0.0
    %209 = vmatpush1.msra.mxu0 0.0
    %210 = vmatprep.subr.mxu0 0.0
    %211 = vmatpush1.msra.mxu0 0.0
    %212 = vmatprep.subr.mxu0 0.0
    %213 = vmatpush1.msra.mxu0 0.0
    %214 = vmatprep.mubr.f32.mxu0 0.0
    %215 = vmatmul.mubr.f32.gmra.mrb[0].mxu0 %v148
    %v216 = vpop.f32.mrb[0].mxu0
    %v217 = vadd.f32 0.0, %v216
    %v218 = vpop.f32.mrb[0].mxu0
    %219 = vdwg.mxu0
    %v220 = vadd.f32 %v139, %v217
    %v221 = vxor.u32 %v220, 2147483648
    %v222 = vmul.f32 %v221, 1.442695
    %v223 = vpow.pop %v222
    %v224 = vadd.f32 %v223, 1.0
    %v225 = vrcp.pop %v224
    %v226 = vmul.f32 1.0, %v225
    %v227 = vtanh.pop %v220
    %v229 = vlaneseq
    %v230 = vshrl.u32 %v229, 7
    %v231 = vsub.s32 0, %v230
    %v232 = vrot.slane %v145, %v231
    %233 = vrot.lane.b32.xlu0 %v232, 16
    %v234 = vpop.permute.xlu0 %233
    %v236 = vmul.f32 %v226, %v234
    %238 = vrot.lane.b32.xlu0 %v227, 96
    %v239 = vpop.permute.xlu0 %238
    %v241 = vmul.f32 %v226, %v239
    %243 = vrot.lane.b32.xlu0 %v241, 16
    %v244 = vpop.permute.xlu0 %243
    %v246 = vadd.f32 %v236, %v244
    %v247 = vtanh.pop %v246
    %249 = vrot.lane.b32.xlu0 %v247, 32
    %v250 = vpop.permute.xlu0 %249
    %v252 = vmul.f32 %v226, %v250
    %254 = vrot.lane.b32.xlu0 %v252, 80
    %v255 = vpop.permute.xlu0 %254
    %v256 = vsel %vm146, %v255, 0
    %258 = vmatprep.subr.mxu0 0.0
    %259 = vmatpush1.msra.mxu0 %v142
    %260 = vmatprep.subr.mxu0 0.0
    %261 = vmatpush1.msra.mxu0 %v143
    %262 = vmatprep.subr.mxu0 0.0
    %263 = vmatpush1.msra.mxu0 0.0
    %264 = vmatprep.subr.mxu0 0.0
    %265 = vmatpush1.msra.mxu0 0.0
    %266 = vmatprep.subr.mxu0 0.0
    %267 = vmatpush1.msra.mxu0 0.0
    %268 = vmatprep.subr.mxu0 0.0
    %269 = vmatpush1.msra.mxu0 0.0
    %270 = vmatprep.subr.mxu0 0.0
    %271 = vmatpush1.msra.mxu0 0.0
    %272 = vmatprep.subr.mxu0 0.0
    %273 = vmatpush1.msra.mxu0 0.0
    %274 = vmatprep.subr.mxu0 0.0
    %275 = vmatpush1.msra.mxu0 0.0
    %276 = vmatprep.subr.mxu0 0.0
    %277 = vmatpush1.msra.mxu0 0.0
    %278 = vmatprep.subr.mxu0 0.0
    %279 = vmatpush1.msra.mxu0 0.0
    %280 = vmatprep.subr.mxu0 0.0
    %281 = vmatpush1.msra.mxu0 0.0
    %282 = vmatprep.subr.mxu0 0.0
    %283 = vmatpush1.msra.mxu0 0.0
    %284 = vmatprep.subr.mxu0 0.0
    %285 = vmatpush1.msra.mxu0 0.0
    %286 = vmatprep.subr.mxu0 0.0
    %287 = vmatpush1.msra.mxu0 0.0
    %288 = vmatprep.subr.mxu0 0.0
    %289 = vmatpush1.msra.mxu0 0.0
    %290 = vmatprep.subr.mxu0 0.0
    %291 = vmatpush1.msra.mxu0 0.0
    %292 = vmatprep.subr.mxu0 0.0
    %293 = vmatpush1.msra.mxu0 0.0
    %294 = vmatprep.subr.mxu0 0.0
    %295 = vmatpush1.msra.mxu0 0.0
    %296 = vmatprep.subr.mxu0 0.0
    %297 = vmatpush1.msra.mxu0 0.0
    %298 = vmatprep.subr.mxu0 0.0
    %299 = vmatpush1.msra.mxu0 0.0
    %300 = vmatprep.subr.mxu0 0.0
    %301 = vmatpush1.msra.mxu0 0.0
    %302 = vmatprep.subr.mxu0 0.0
    %303 = vmatpush1.msra.mxu0 0.0
    %304 = vmatprep.subr.mxu0 0.0
    %305 = vmatpush1.msra.mxu0 0.0
    %306 = vmatprep.subr.mxu0 0.0
    %307 = vmatpush1.msra.mxu0 0.0
    %308 = vmatprep.subr.mxu0 0.0
    %309 = vmatpush1.msra.mxu0 0.0
    %310 = vmatprep.subr.mxu0 0.0
    %311 = vmatpush1.msra.mxu0 0.0
    %312 = vmatprep.subr.mxu0 0.0
    %313 = vmatpush1.msra.mxu0 0.0
    %314 = vmatprep.subr.mxu0 0.0
    %315 = vmatpush1.msra.mxu0 0.0
    %316 = vmatprep.subr.mxu0 0.0
    %317 = vmatpush1.msra.mxu0 0.0
    %318 = vmatprep.subr.mxu0 0.0
    %319 = vmatpush1.msra.mxu0 0.0
    %320 = vmatprep.subr.mxu0 0.0
    %321 = vmatpush1.msra.mxu0 0.0
    %322 = vmatprep.mubr.f32.mxu0 0.0
    %323 = vmatmul.mubr.f32.gmra.mrb[0].mxu0 %v256
    %v324 = vpop.f32.mrb[0].mxu0
    %v325 = vadd.f32 0.0, %v324
    %v326 = vpop.f32.mrb[0].mxu0
    %327 = vdwg.mxu0
    %v329 = vrot.slane %v325, 7
    %v331 = vadd.f32 %v139, %v329
    %v332 = vxor.u32 %v331, 2147483648
    %v333 = vmul.f32 %v332, 1.442695
    %v334 = vpow.pop %v333
    %v335 = vadd.f32 %v334, 1.0
    %v336 = vrcp.pop %v335
    %v337 = vmul.f32 1.0, %v336
    %v338 = vtanh.pop %v331
    %v340 = vrot.slane %v246, 7
    %v342 = vmul.f32 %v337, %v340
    %344 = vrot.lane.b32.xlu0 %v338, 96
    %v345 = vpop.permute.xlu0 %344
    %v347 = vmul.f32 %v337, %v345
    %349 = vrot.lane.b32.xlu0 %v347, 16
    %v350 = vpop.permute.xlu0 %349
    %v352 = vadd.f32 %v342, %v350
    %v353 = vtanh.pop %v352
    %355 = vrot.lane.b32.xlu0 %v353, 32
    %v356 = vpop.permute.xlu0 %355
    %v358 = vmul.f32 %v337, %v356
    %v360 = vrot.slane %v358, 1
    %361 = vrot.lane.b32.xlu0 %v360, 80
    %v362 = vpop.permute.xlu0 %361
    %v363 = vsel %vm146, %v362, 0
    %365 = vmatprep.subr.mxu0 0.0
    %366 = vmatpush1.msra.mxu0 %v142
    %367 = vmatprep.subr.mxu0 0.0
    %368 = vmatpush1.msra.mxu0 %v143
    %369 = vmatprep.subr.mxu0 0.0
    %370 = vmatpush1.msra.mxu0 0.0
    %371 = vmatprep.subr.mxu0 0.0
    %372 = vmatpush1.msra.mxu0 0.0
    %373 = vmatprep.subr.mxu0 0.0
    %374 = vmatpush1.msra.mxu0 0.0
    %375 = vmatprep.subr.mxu0 0.0
    %376 = vmatpush1.msra.mxu0 0.0
    %377 = vmatprep.subr.mxu0 0.0
    %378 = vmatpush1.msra.mxu0 0.0
    %379 = vmatprep.subr.mxu0 0.0
    %380 = vmatpush1.msra.mxu0 0.0
    %381 = vmatprep.subr.mxu0 0.0
    %382 = vmatpush1.msra.mxu0 0.0
    %383 = vmatprep.subr.mxu0 0.0
    %384 = vmatpush1.msra.mxu0 0.0
    %385 = vmatprep.subr.mxu0 0.0
    %386 = vmatpush1.msra.mxu0 0.0
    %387 = vmatprep.subr.mxu0 0.0
    %388 = vmatpush1.msra.mxu0 0.0
    %389 = vmatprep.subr.mxu0 0.0
    %390 = vmatpush1.msra.mxu0 0.0
    %391 = vmatprep.subr.mxu0 0.0
    %392 = vmatpush1.msra.mxu0 0.0
    %393 = vmatprep.subr.mxu0 0.0
    %394 = vmatpush1.msra.mxu0 0.0
    %395 = vmatprep.subr.mxu0 0.0
    %396 = vmatpush1.msra.mxu0 0.0
    %397 = vmatprep.subr.mxu0 0.0
    %398 = vmatpush1.msra.mxu0 0.0
    %399 = vmatprep.subr.mxu0 0.0
    %400 = vmatpush1.msra.mxu0 0.0
    %401 = vmatprep.subr.mxu0 0.0
    %402 = vmatpush1.msra.mxu0 0.0
    %403 = vmatprep.subr.mxu0 0.0
    %404 = vmatpush1.msra.mxu0 0.0
    %405 = vmatprep.subr.mxu0 0.0
    %406 = vmatpush1.msra.mxu0 0.0
    %407 = vmatprep.subr.mxu0 0.0
    %408 = vmatpush1.msra.mxu0 0.0
    %409 = vmatprep.subr.mxu0 0.0
    %410 = vmatpush1.msra.mxu0 0.0
    %411 = vmatprep.subr.mxu0 0.0
    %412 = vmatpush1.msra.mxu0 0.0
    %413 = vmatprep.subr.mxu0 0.0
    %414 = vmatpush1.msra.mxu0 0.0
    %415 = vmatprep.subr.mxu0 0.0
    %416 = vmatpush1.msra.mxu0 0.0
    %417 = vmatprep.subr.mxu0 0.0
    %418 = vmatpush1.msra.mxu0 0.0
    %419 = vmatprep.subr.mxu0 0.0
    %420 = vmatpush1.msra.mxu0 0.0
    %421 = vmatprep.subr.mxu0 0.0
    %422 = vmatpush1.msra.mxu0 0.0
    %423 = vmatprep.subr.mxu0 0.0
    %424 = vmatpush1.msra.mxu0 0.0
    %425 = vmatprep.subr.mxu0 0.0
    %426 = vmatpush1.msra.mxu0 0.0
    %427 = vmatprep.subr.mxu0 0.0
    %428 = vmatpush1.msra.mxu0 0.0
    %429 = vmatprep.mubr.f32.mxu0 0.0
    %430 = vmatmul.mubr.f32.gmra.mrb[0].mxu0 %v363
    %v431 = vpop.f32.mrb[0].mxu0
    %v432 = vadd.f32 0.0, %v431
    %v433 = vpop.f32.mrb[0].mxu0
    %434 = vdwg.mxu0
    %v436 = vrot.slane %v432, 6
    %v438 = vadd.f32 %v139, %v436
    %v439 = vxor.u32 %v438, 2147483648
    %v440 = vmul.f32 %v439, 1.442695
    %v441 = vpow.pop %v440
    %v442 = vadd.f32 %v441, 1.0
    %v443 = vrcp.pop %v442
    %v444 = vmul.f32 1.0, %v443
    %v445 = vtanh.pop %v438
    %v447 = vrot.slane %v352, 7
    %v449 = vmul.f32 %v444, %v447
    %451 = vrot.lane.b32.xlu0 %v445, 96
    %v452 = vpop.permute.xlu0 %451
    %v454 = vmul.f32 %v444, %v452
    %456 = vrot.lane.b32.xlu0 %v454, 16
    %v457 = vpop.permute.xlu0 %456
    %v459 = vadd.f32 %v449, %v457
    %v460 = vtanh.pop %v459
    %462 = vrot.lane.b32.xlu0 %v460, 32
    %v463 = vpop.permute.xlu0 %462
    %v465 = vmul.f32 %v444, %v463
    %v467 = vrot.slane %v465, 2
    %468 = vrot.lane.b32.xlu0 %v467, 80
    %v469 = vpop.permute.xlu0 %468
    %v470 = vsel %vm146, %v469, 0
    %472 = vmatprep.subr.mxu0 0.0
    %473 = vmatpush1.msra.mxu0 %v142
    %474 = vmatprep.subr.mxu0 0.0
    %475 = vmatpush1.msra.mxu0 %v143
    %476 = vmatprep.subr.mxu0 0.0
    %477 = vmatpush1.msra.mxu0 0.0
    %478 = vmatprep.subr.mxu0 0.0
    %479 = vmatpush1.msra.mxu0 0.0
    %480 = vmatprep.subr.mxu0 0.0
    %481 = vmatpush1.msra.mxu0 0.0
    %482 = vmatprep.subr.mxu0 0.0
    %483 = vmatpush1.msra.mxu0 0.0
    %484 = vmatprep.subr.mxu0 0.0
    %485 = vmatpush1.msra.mxu0 0.0
    %486 = vmatprep.subr.mxu0 0.0
    %487 = vmatpush1.msra.mxu0 0.0
    %488 = vmatprep.subr.mxu0 0.0
    %489 = vmatpush1.msra.mxu0 0.0
    %490 = vmatprep.subr.mxu0 0.0
    %491 = vmatpush1.msra.mxu0 0.0
    %492 = vmatprep.subr.mxu0 0.0
    %493 = vmatpush1.msra.mxu0 0.0
    %494 = vmatprep.subr.mxu0 0.0
    %495 = vmatpush1.msra.mxu0 0.0
    %496 = vmatprep.subr.mxu0 0.0
    %497 = vmatpush1.msra.mxu0 0.0
    %498 = vmatprep.subr.mxu0 0.0
    %499 = vmatpush1.msra.mxu0 0.0
    %500 = vmatprep.subr.mxu0 0.0
    %501 = vmatpush1.msra.mxu0 0.0
    %502 = vmatprep.subr.mxu0 0.0
    %503 = vmatpush1.msra.mxu0 0.0
    %504 = vmatprep.subr.mxu0 0.0
    %505 = vmatpush1.msra.mxu0 0.0
    %506 = vmatprep.subr.mxu0 0.0
    %507 = vmatpush1.msra.mxu0 0.0
    %508 = vmatprep.subr.mxu0 0.0
    %509 = vmatpush1.msra.mxu0 0.0
    %510 = vmatprep.subr.mxu0 0.0
    %511 = vmatpush1.msra.mxu0 0.0
    %512 = vmatprep.subr.mxu0 0.0
    %513 = vmatpush1.msra.mxu0 0.0
    %514 = vmatprep.subr.mxu0 0.0
    %515 = vmatpush1.msra.mxu0 0.0
    %516 = vmatprep.subr.mxu0 0.0
    %517 = vmatpush1.msra.mxu0 0.0
    %518 = vmatprep.subr.mxu0 0.0
    %519 = vmatpush1.msra.mxu0 0.0
    %520 = vmatprep.subr.mxu0 0.0
    %521 = vmatpush1.msra.mxu0 0.0
    %522 = vmatprep.subr.mxu0 0.0
    %523 = vmatpush1.msra.mxu0 0.0
    %524 = vmatprep.subr.mxu0 0.0
    %525 = vmatpush1.msra.mxu0 0.0
    %526 = vmatprep.subr.mxu0 0.0
    %527 = vmatpush1.msra.mxu0 0.0
    %528 = vmatprep.subr.mxu0 0.0
    %529 = vmatpush1.msra.mxu0 0.0
    %530 = vmatprep.subr.mxu0 0.0
    %531 = vmatpush1.msra.mxu0 0.0
    %532 = vmatprep.subr.mxu0 0.0
    %533 = vmatpush1.msra.mxu0 0.0
    %534 = vmatprep.subr.mxu0 0.0
    %535 = vmatpush1.msra.mxu0 0.0
    %536 = vmatprep.mubr.f32.mxu0 0.0
    %537 = vmatmul.mubr.f32.gmra.mrb[0].mxu0 %v470
    %v538 = vpop.f32.mrb[0].mxu0
    %v539 = vadd.f32 0.0, %v538
    %v540 = vpop.f32.mrb[0].mxu0
    %541 = vdwg.mxu0
    %v543 = vrot.slane %v539, 5
    %v545 = vadd.f32 %v139, %v543
    %v546 = vxor.u32 %v545, 2147483648
    %v547 = vmul.f32 %v546, 1.442695
    %v548 = vpow.pop %v547
    %v549 = vadd.f32 %v548, 1.0
    %v550 = vrcp.pop %v549
    %v551 = vmul.f32 1.0, %v550
    %v552 = vtanh.pop %v545
    %v554 = vrot.slane %v459, 7
    %v556 = vmul.f32 %v551, %v554
    %558 = vrot.lane.b32.xlu0 %v552, 96
    %v559 = vpop.permute.xlu0 %558
    %v561 = vmul.f32 %v551, %v559
    %563 = vrot.lane.b32.xlu0 %v561, 16
    %v564 = vpop.permute.xlu0 %563
    %v566 = vadd.f32 %v556, %v564
    %v567 = vtanh.pop %v566
    %569 = vrot.lane.b32.xlu0 %v567, 32
    %v570 = vpop.permute.xlu0 %569
    %v572 = vmul.f32 %v551, %v570
    %v574 = vrot.slane %v572, 3
    %575 = vrot.lane.b32.xlu0 %v574, 80
    %v576 = vpop.permute.xlu0 %575
    %v577 = vsel %vm146, %v576, 0
    %579 = vmatprep.subr.mxu0 0.0
    %580 = vmatpush1.msra.mxu0 %v142
    %581 = vmatprep.subr.mxu0 0.0
    %582 = vmatpush1.msra.mxu0 %v143
    %583 = vmatprep.subr.mxu0 0.0
    %584 = vmatpush1.msra.mxu0 0.0
    %585 = vmatprep.subr.mxu0 0.0
    %586 = vmatpush1.msra.mxu0 0.0
    %587 = vmatprep.subr.mxu0 0.0
    %588 = vmatpush1.msra.mxu0 0.0
    %589 = vmatprep.subr.mxu0 0.0
    %590 = vmatpush1.msra.mxu0 0.0
    %591 = vmatprep.subr.mxu0 0.0
    %592 = vmatpush1.msra.mxu0 0.0
    %593 = vmatprep.subr.mxu0 0.0
    %594 = vmatpush1.msra.mxu0 0.0
    %595 = vmatprep.subr.mxu0 0.0
    %596 = vmatpush1.msra.mxu0 0.0
    %597 = vmatprep.subr.mxu0 0.0
    %598 = vmatpush1.msra.mxu0 0.0
    %599 = vmatprep.subr.mxu0 0.0
    %600 = vmatpush1.msra.mxu0 0.0
    %601 = vmatprep.subr.mxu0 0.0
    %602 = vmatpush1.msra.mxu0 0.0
    %603 = vmatprep.subr.mxu0 0.0
    %604 = vmatpush1.msra.mxu0 0.0
    %605 = vmatprep.subr.mxu0 0.0
    %606 = vmatpush1.msra.mxu0 0.0
    %607 = vmatprep.subr.mxu0 0.0
    %608 = vmatpush1.msra.mxu0 0.0
    %609 = vmatprep.subr.mxu0 0.0
    %610 = vmatpush1.msra.mxu0 0.0
    %611 = vmatprep.subr.mxu0 0.0
    %612 = vmatpush1.msra.mxu0 0.0
    %613 = vmatprep.subr.mxu0 0.0
    %614 = vmatpush1.msra.mxu0 0.0
    %615 = vmatprep.subr.mxu0 0.0
    %616 = vmatpush1.msra.mxu0 0.0
    %617 = vmatprep.subr.mxu0 0.0
    %618 = vmatpush1.msra.mxu0 0.0
    %619 = vmatprep.subr.mxu0 0.0
    %620 = vmatpush1.msra.mxu0 0.0
    %621 = vmatprep.subr.mxu0 0.0
    %622 = vmatpush1.msra.mxu0 0.0
    %623 = vmatprep.subr.mxu0 0.0
    %624 = vmatpush1.msra.mxu0 0.0
    %625 = vmatprep.subr.mxu0 0.0
    %626 = vmatpush1.msra.mxu0 0.0
    %627 = vmatprep.subr.mxu0 0.0
    %628 = vmatpush1.msra.mxu0 0.0
    %629 = vmatprep.subr.mxu0 0.0
    %630 = vmatpush1.msra.mxu0 0.0
    %631 = vmatprep.subr.mxu0 0.0
    %632 = vmatpush1.msra.mxu0 0.0
    %633 = vmatprep.subr.mxu0 0.0
    %634 = vmatpush1.msra.mxu0 0.0
    %635 = vmatprep.subr.mxu0 0.0
    %636 = vmatpush1.msra.mxu0 0.0
    %637 = vmatprep.subr.mxu0 0.0
    %638 = vmatpush1.msra.mxu0 0.0
    %639 = vmatprep.subr.mxu0 0.0
    %640 = vmatpush1.msra.mxu0 0.0
    %641 = vmatprep.subr.mxu0 0.0
    %642 = vmatpush1.msra.mxu0 0.0
    %643 = vmatprep.mubr.f32.mxu0 0.0
    %644 = vmatmul.mubr.f32.gmra.mrb[0].mxu0 %v577
    %v645 = vpop.f32.mrb[0].mxu0
    %v646 = vadd.f32 0.0, %v645
    %v647 = vpop.f32.mrb[0].mxu0
    %648 = vdwg.mxu0
    %v650 = vrot.slane %v646, 4
    %v652 = vadd.f32 %v139, %v650
    %v653 = vxor.u32 %v652, 2147483648
    %v654 = vmul.f32 %v653, 1.442695
    %v655 = vpow.pop %v654
    %v656 = vadd.f32 %v655, 1.0
    %v657 = vrcp.pop %v656
    %v658 = vmul.f32 1.0, %v657
    %v659 = vtanh.pop %v652
    %v661 = vrot.slane %v566, 7
    %v663 = vmul.f32 %v658, %v661
    %665 = vrot.lane.b32.xlu0 %v659, 96
    %v666 = vpop.permute.xlu0 %665
    %v668 = vmul.f32 %v658, %v666
    %670 = vrot.lane.b32.xlu0 %v668, 16
    %v671 = vpop.permute.xlu0 %670
    %v673 = vadd.f32 %v663, %v671
    %v674 = vtanh.pop %v673
    %676 = vrot.lane.b32.xlu0 %v674, 32
    %v677 = vpop.permute.xlu0 %676
    %v679 = vmul.f32 %v658, %v677
    %v681 = vrot.slane %v679, 4
    %682 = vrot.lane.b32.xlu0 %v681, 80
    %v683 = vpop.permute.xlu0 %682
    %v684 = vsel %vm146, %v683, 0
    %686 = vmatprep.subr.mxu0 0.0
    %687 = vmatpush1.msra.mxu0 %v142
    %688 = vmatprep.subr.mxu0 0.0
    %689 = vmatpush1.msra.mxu0 %v143
    %690 = vmatprep.subr.mxu0 0.0
    %691 = vmatpush1.msra.mxu0 0.0
    %692 = vmatprep.subr.mxu0 0.0
    %693 = vmatpush1.msra.mxu0 0.0
    %694 = vmatprep.subr.mxu0 0.0
    %695 = vmatpush1.msra.mxu0 0.0
    %696 = vmatprep.subr.mxu0 0.0
    %697 = vmatpush1.msra.mxu0 0.0
    %698 = vmatprep.subr.mxu0 0.0
    %699 = vmatpush1.msra.mxu0 0.0
    %700 = vmatprep.subr.mxu0 0.0
    %701 = vmatpush1.msra.mxu0 0.0
    %702 = vmatprep.subr.mxu0 0.0
    %703 = vmatpush1.msra.mxu0 0.0
    %704 = vmatprep.subr.mxu0 0.0
    %705 = vmatpush1.msra.mxu0 0.0
    %706 = vmatprep.subr.mxu0 0.0
    %707 = vmatpush1.msra.mxu0 0.0
    %708 = vmatprep.subr.mxu0 0.0
    %709 = vmatpush1.msra.mxu0 0.0
    %710 = vmatprep.subr.mxu0 0.0
    %711 = vmatpush1.msra.mxu0 0.0
    %712 = vmatprep.subr.mxu0 0.0
    %713 = vmatpush1.msra.mxu0 0.0
    %714 = vmatprep.subr.mxu0 0.0
    %715 = vmatpush1.msra.mxu0 0.0
    %716 = vmatprep.subr.mxu0 0.0
    %717 = vmatpush1.msra.mxu0 0.0
    %718 = vmatprep.subr.mxu0 0.0
    %719 = vmatpush1.msra.mxu0 0.0
    %720 = vmatprep.subr.mxu0 0.0
    %721 = vmatpush1.msra.mxu0 0.0
    %722 = vmatprep.subr.mxu0 0.0
    %723 = vmatpush1.msra.mxu0 0.0
    %724 = vmatprep.subr.mxu0 0.0
    %725 = vmatpush1.msra.mxu0 0.0
    %726 = vmatprep.subr.mxu0 0.0
    %727 = vmatpush1.msra.mxu0 0.0
    %728 = vmatprep.subr.mxu0 0.0
    %729 = vmatpush1.msra.mxu0 0.0
    %730 = vmatprep.subr.mxu0 0.0
    %731 = vmatpush1.msra.mxu0 0.0
    %732 = vmatprep.subr.mxu0 0.0
    %733 = vmatpush1.msra.mxu0 0.0
    %734 = vmatprep.subr.mxu0 0.0
    %735 = vmatpush1.msra.mxu0 0.0
    %736 = vmatprep.subr.mxu0 0.0
    %737 = vmatpush1.msra.mxu0 0.0
    %738 = vmatprep.subr.mxu0 0.0
    %739 = vmatpush1.msra.mxu0 0.0
    %740 = vmatprep.subr.mxu0 0.0
    %741 = vmatpush1.msra.mxu0 0.0
    %742 = vmatprep.subr.mxu0 0.0
    %743 = vmatpush1.msra.mxu0 0.0
    %744 = vmatprep.subr.mxu0 0.0
    %745 = vmatpush1.msra.mxu0 0.0
    %746 = vmatprep.subr.mxu0 0.0
    %747 = vmatpush1.msra.mxu0 0.0
    %748 = vmatprep.subr.mxu0 0.0
    %749 = vmatpush1.msra.mxu0 0.0
    %750 = vmatprep.mubr.f32.mxu0 0.0
    %751 = vmatmul.mubr.f32.gmra.mrb[0].mxu0 %v684
    %v752 = vpop.f32.mrb[0].mxu0
    %v753 = vadd.f32 0.0, %v752
    %v754 = vpop.f32.mrb[0].mxu0
    %755 = vdwg.mxu0
    %v757 = vrot.slane %v753, 3
    %v759 = vadd.f32 %v139, %v757
    %v760 = vxor.u32 %v759, 2147483648
    %v761 = vmul.f32 %v760, 1.442695
    %v762 = vpow.pop %v761
    %v763 = vadd.f32 %v762, 1.0
    %v764 = vrcp.pop %v763
    %v765 = vmul.f32 1.0, %v764
    %v766 = vtanh.pop %v759
    %v768 = vrot.slane %v673, 7
    %v770 = vmul.f32 %v765, %v768
    %772 = vrot.lane.b32.xlu0 %v766, 96
    %v773 = vpop.permute.xlu0 %772
    %v775 = vmul.f32 %v765, %v773
    %777 = vrot.lane.b32.xlu0 %v775, 16
    %v778 = vpop.permute.xlu0 %777
    %v780 = vadd.f32 %v770, %v778
    %v781 = vtanh.pop %v780
    %783 = vrot.lane.b32.xlu0 %v781, 32
    %v784 = vpop.permute.xlu0 %783
    %v786 = vmul.f32 %v765, %v784
    %v788 = vrot.slane %v786, 5
    %789 = vrot.lane.b32.xlu0 %v788, 80
    %v790 = vpop.permute.xlu0 %789
    %v791 = vsel %vm146, %v790, 0
    %793 = vmatprep.subr.mxu0 0.0
    %794 = vmatpush1.msra.mxu0 %v142
    %795 = vmatprep.subr.mxu0 0.0
    %796 = vmatpush1.msra.mxu0 %v143
    %797 = vmatprep.subr.mxu0 0.0
    %798 = vmatpush1.msra.mxu0 0.0
    %799 = vmatprep.subr.mxu0 0.0
    %800 = vmatpush1.msra.mxu0 0.0
    %801 = vmatprep.subr.mxu0 0.0
    %802 = vmatpush1.msra.mxu0 0.0
    %803 = vmatprep.subr.mxu0 0.0
    %804 = vmatpush1.msra.mxu0 0.0
    %805 = vmatprep.subr.mxu0 0.0
    %806 = vmatpush1.msra.mxu0 0.0
    %807 = vmatprep.subr.mxu0 0.0
    %808 = vmatpush1.msra.mxu0 0.0
    %809 = vmatprep.subr.mxu0 0.0
    %810 = vmatpush1.msra.mxu0 0.0
    %811 = vmatprep.subr.mxu0 0.0
    %812 = vmatpush1.msra.mxu0 0.0
    %813 = vmatprep.subr.mxu0 0.0
    %814 = vmatpush1.msra.mxu0 0.0
    %815 = vmatprep.subr.mxu0 0.0
    %816 = vmatpush1.msra.mxu0 0.0
    %817 = vmatprep.subr.mxu0 0.0
    %818 = vmatpush1.msra.mxu0 0.0
    %819 = vmatprep.subr.mxu0 0.0
    %820 = vmatpush1.msra.mxu0 0.0
    %821 = vmatprep.subr.mxu0 0.0
    %822 = vmatpush1.msra.mxu0 0.0
    %823 = vmatprep.subr.mxu0 0.0
    %824 = vmatpush1.msra.mxu0 0.0
    %825 = vmatprep.subr.mxu0 0.0
    %826 = vmatpush1.msra.mxu0 0.0
    %827 = vmatprep.subr.mxu0 0.0
    %828 = vmatpush1.msra.mxu0 0.0
    %829 = vmatprep.subr.mxu0 0.0
    %830 = vmatpush1.msra.mxu0 0.0
    %831 = vmatprep.subr.mxu0 0.0
    %832 = vmatpush1.msra.mxu0 0.0
    %833 = vmatprep.subr.mxu0 0.0
    %834 = vmatpush1.msra.mxu0 0.0
    %835 = vmatprep.subr.mxu0 0.0
    %836 = vmatpush1.msra.mxu0 0.0
    %837 = vmatprep.subr.mxu0 0.0
    %838 = vmatpush1.msra.mxu0 0.0
    %839 = vmatprep.subr.mxu0 0.0
    %840 = vmatpush1.msra.mxu0 0.0
    %841 = vmatprep.subr.mxu0 0.0
    %842 = vmatpush1.msra.mxu0 0.0
    %843 = vmatprep.subr.mxu0 0.0
    %844 = vmatpush1.msra.mxu0 0.0
    %845 = vmatprep.subr.mxu0 0.0
    %846 = vmatpush1.msra.mxu0 0.0
    %847 = vmatprep.subr.mxu0 0.0
    %848 = vmatpush1.msra.mxu0 0.0
    %849 = vmatprep.subr.mxu0 0.0
    %850 = vmatpush1.msra.mxu0 0.0
    %851 = vmatprep.subr.mxu0 0.0
    %852 = vmatpush1.msra.mxu0 0.0
    %853 = vmatprep.subr.mxu0 0.0
    %854 = vmatpush1.msra.mxu0 0.0
    %855 = vmatprep.subr.mxu0 0.0
    %856 = vmatpush1.msra.mxu0 0.0
    %857 = vmatprep.mubr.f32.mxu0 0.0
    %858 = vmatmul.mubr.f32.gmra.mrb[0].mxu0 %v791
    %v859 = vpop.f32.mrb[0].mxu0
    %v860 = vadd.f32 0.0, %v859
    %v861 = vpop.f32.mrb[0].mxu0
    %862 = vdwg.mxu0
    %v864 = vrot.slane %v860, 2
    %v866 = vadd.f32 %v139, %v864
    %v867 = vxor.u32 %v866, 2147483648
    %v868 = vmul.f32 %v867, 1.442695
    %v869 = vpow.pop %v868
    %v870 = vadd.f32 %v869, 1.0
    %v871 = vrcp.pop %v870
    %v872 = vmul.f32 1.0, %v871
    %v873 = vtanh.pop %v866
    %v875 = vrot.slane %v780, 7
    %v877 = vmul.f32 %v872, %v875
    %879 = vrot.lane.b32.xlu0 %v873, 96
    %v880 = vpop.permute.xlu0 %879
    %v882 = vmul.f32 %v872, %v880
    %884 = vrot.lane.b32.xlu0 %v882, 16
    %v885 = vpop.permute.xlu0 %884
    %v887 = vadd.f32 %v877, %v885
    %v888 = vtanh.pop %v887
    %890 = vrot.lane.b32.xlu0 %v888, 32
    %v891 = vpop.permute.xlu0 %890
    %v893 = vmul.f32 %v872, %v891
    %v895 = vrot.slane %v893, 6
    %896 = vrot.lane.b32.xlu0 %v895, 80
    %v897 = vpop.permute.xlu0 %896
    %v898 = vsel %vm146, %v897, 0
    %900 = vmatprep.subr.mxu0 0.0
    %901 = vmatpush1.msra.mxu0 %v142
    %902 = vmatprep.subr.mxu0 0.0
    %903 = vmatpush1.msra.mxu0 %v143
    %904 = vmatprep.subr.mxu0 0.0
    %905 = vmatpush1.msra.mxu0 0.0
    %906 = vmatprep.subr.mxu0 0.0
    %907 = vmatpush1.msra.mxu0 0.0
    %908 = vmatprep.subr.mxu0 0.0
    %909 = vmatpush1.msra.mxu0 0.0
    %910 = vmatprep.subr.mxu0 0.0
    %911 = vmatpush1.msra.mxu0 0.0
    %912 = vmatprep.subr.mxu0 0.0
    %913 = vmatpush1.msra.mxu0 0.0
    %914 = vmatprep.subr.mxu0 0.0
    %915 = vmatpush1.msra.mxu0 0.0
    %916 = vmatprep.subr.mxu0 0.0
    %917 = vmatpush1.msra.mxu0 0.0
    %918 = vmatprep.subr.mxu0 0.0
    %919 = vmatpush1.msra.mxu0 0.0
    %920 = vmatprep.subr.mxu0 0.0
    %921 = vmatpush1.msra.mxu0 0.0
    %922 = vmatprep.subr.mxu0 0.0
    %923 = vmatpush1.msra.mxu0 0.0
    %924 = vmatprep.subr.mxu0 0.0
    %925 = vmatpush1.msra.mxu0 0.0
    %926 = vmatprep.subr.mxu0 0.0
    %927 = vmatpush1.msra.mxu0 0.0
    %928 = vmatprep.subr.mxu0 0.0
    %929 = vmatpush1.msra.mxu0 0.0
    %930 = vmatprep.subr.mxu0 0.0
    %931 = vmatpush1.msra.mxu0 0.0
    %932 = vmatprep.subr.mxu0 0.0
    %933 = vmatpush1.msra.mxu0 0.0
    %934 = vmatprep.subr.mxu0 0.0
    %935 = vmatpush1.msra.mxu0 0.0
    %936 = vmatprep.subr.mxu0 0.0
    %937 = vmatpush1.msra.mxu0 0.0
    %938 = vmatprep.subr.mxu0 0.0
    %939 = vmatpush1.msra.mxu0 0.0
    %940 = vmatprep.subr.mxu0 0.0
    %941 = vmatpush1.msra.mxu0 0.0
    %942 = vmatprep.subr.mxu0 0.0
    %943 = vmatpush1.msra.mxu0 0.0
    %944 = vmatprep.subr.mxu0 0.0
    %945 = vmatpush1.msra.mxu0 0.0
    %946 = vmatprep.subr.mxu0 0.0
    %947 = vmatpush1.msra.mxu0 0.0
    %948 = vmatprep.subr.mxu0 0.0
    %949 = vmatpush1.msra.mxu0 0.0
    %950 = vmatprep.subr.mxu0 0.0
    %951 = vmatpush1.msra.mxu0 0.0
    %952 = vmatprep.subr.mxu0 0.0
    %953 = vmatpush1.msra.mxu0 0.0
    %954 = vmatprep.subr.mxu0 0.0
    %955 = vmatpush1.msra.mxu0 0.0
    %956 = vmatprep.subr.mxu0 0.0
    %957 = vmatpush1.msra.mxu0 0.0
    %958 = vmatprep.subr.mxu0 0.0
    %959 = vmatpush1.msra.mxu0 0.0
    %960 = vmatprep.subr.mxu0 0.0
    %961 = vmatpush1.msra.mxu0 0.0
    %962 = vmatprep.subr.mxu0 0.0
    %963 = vmatpush1.msra.mxu0 0.0
    %964 = vmatprep.mubr.f32.mxu0 0.0
    %965 = vmatmul.mubr.f32.gmra.mrb[0].mxu0 %v898
    %v966 = vpop.f32.mrb[0].mxu0
    %v967 = vadd.f32 0.0, %v966
    %v968 = vpop.f32.mrb[0].mxu0
    %969 = vdwg.mxu0
    %v971 = vrot.slane %v967, 1
    %v973 = vadd.f32 %v139, %v971
    %v974 = vxor.u32 %v973, 2147483648
    %v975 = vmul.f32 %v974, 1.442695
    %v976 = vpow.pop %v975
    %v977 = vadd.f32 %v976, 1.0
    %v978 = vrcp.pop %v977
    %v979 = vmul.f32 1.0, %v978
    %v980 = vtanh.pop %v973
    %v982 = vrot.slane %v887, 7
    %v984 = vmul.f32 %v979, %v982
    %986 = vrot.lane.b32.xlu0 %v980, 96
    %v987 = vpop.permute.xlu0 %986
    %v989 = vmul.f32 %v979, %v987
    %991 = vrot.lane.b32.xlu0 %v989, 16
    %v992 = vpop.permute.xlu0 %991
    %v994 = vadd.f32 %v984, %v992
    %v995 = vtanh.pop %v994
    %997 = vrot.lane.b32.xlu0 %v995, 32
    %v998 = vpop.permute.xlu0 %997
    %v1000 = vmul.f32 %v979, %v998
    %vm1001 = vcmask 1040384
    %v1002 = vsel %vm1001, %v252, %v358
    %vm1003 = vcmask 1041408
    %v1004 = vsel %vm1003, %v1002, %v465
    %vm1005 = vcmask 1042432
    %v1006 = vsel %vm1005, %v1004, %v572
    %v1007 = vsel %vm68, %v1006, %v679
    %vm1008 = vcmask 1044480
    %v1009 = vsel %vm1008, %v1007, %v786
    %vm1010 = vcmask 1045504
    %v1011 = vsel %vm1010, %v1009, %v893
    %vm1012 = vcmask 1046528
    %v1013 = vsel %vm1012, %v1011, %v1000
    %v1014 = vld [vmem:[%s6] sm:$0xff]
    %v1015 = vld [vmem:[%s6 + $0x8] sm:$0xff]
    %s1016 = sld [smem:[#allocation2]]
    %v1017 = vstv %s1016
    %1019 = vrot.lane.b32.xlu0 %v1013, 80
    %v1020 = vpop.permute.xlu0 %1019
    %v1021 = vsel %vm146, %v1020, 0
    %1023 = vmatprep.subr.mxu0 0.0
    %1024 = vmatpush1.msra.mxu0 %v1014
    %1025 = vmatprep.subr.mxu0 0.0
    %1026 = vmatpush1.msra.mxu0 %v1015
    %1027 = vmatprep.subr.mxu0 0.0
    %1028 = vmatpush1.msra.mxu0 0.0
    %1029 = vmatprep.subr.mxu0 0.0
    %1030 = vmatpush1.msra.mxu0 0.0
    %1031 = vmatprep.subr.mxu0 0.0
    %1032 = vmatpush1.msra.mxu0 0.0
    %1033 = vmatprep.subr.mxu0 0.0
    %1034 = vmatpush1.msra.mxu0 0.0
    %1035 = vmatprep.subr.mxu0 0.0
    %1036 = vmatpush1.msra.mxu0 0.0
    %1037 = vmatprep.subr.mxu0 0.0
    %1038 = vmatpush1.msra.mxu0 0.0
    %1039 = vmatprep.subr.mxu0 0.0
    %1040 = vmatpush1.msra.mxu0 0.0
    %1041 = vmatprep.subr.mxu0 0.0
    %1042 = vmatpush1.msra.mxu0 0.0
    %1043 = vmatprep.subr.mxu0 0.0
    %1044 = vmatpush1.msra.mxu0 0.0
    %1045 = vmatprep.subr.mxu0 0.0
    %1046 = vmatpush1.msra.mxu0 0.0
    %1047 = vmatprep.subr.mxu0 0.0
    %1048 = vmatpush1.msra.mxu0 0.0
    %1049 = vmatprep.subr.mxu0 0.0
    %1050 = vmatpush1.msra.mxu0 0.0
    %1051 = vmatprep.subr.mxu0 0.0
    %1052 = vmatpush1.msra.mxu0 0.0
    %1053 = vmatprep.subr.mxu0 0.0
    %1054 = vmatpush1.msra.mxu0 0.0
    %1055 = vmatprep.subr.mxu0 0.0
    %1056 = vmatpush1.msra.mxu0 0.0
    %1057 = vmatprep.subr.mxu0 0.0
    %1058 = vmatpush1.msra.mxu0 0.0
    %1059 = vmatprep.subr.mxu0 0.0
    %1060 = vmatpush1.msra.mxu0 0.0
    %1061 = vmatprep.subr.mxu0 0.0
    %1062 = vmatpush1.msra.mxu0 0.0
    %1063 = vmatprep.subr.mxu0 0.0
    %1064 = vmatpush1.msra.mxu0 0.0
    %1065 = vmatprep.subr.mxu0 0.0
    %1066 = vmatpush1.msra.mxu0 0.0
    %1067 = vmatprep.subr.mxu0 0.0
    %1068 = vmatpush1.msra.mxu0 0.0
    %1069 = vmatprep.subr.mxu0 0.0
    %1070 = vmatpush1.msra.mxu0 0.0
    %1071 = vmatprep.subr.mxu0 0.0
    %1072 = vmatpush1.msra.mxu0 0.0
    %1073 = vmatprep.subr.mxu0 0.0
    %1074 = vmatpush1.msra.mxu0 0.0
    %1075 = vmatprep.subr.mxu0 0.0
    %1076 = vmatpush1.msra.mxu0 0.0
    %1077 = vmatprep.subr.mxu0 0.0
    %1078 = vmatpush1.msra.mxu0 0.0
    %1079 = vmatprep.subr.mxu0 0.0
    %1080 = vmatpush1.msra.mxu0 0.0
    %1081 = vmatprep.subr.mxu0 0.0
    %1082 = vmatpush1.msra.mxu0 0.0
    %1083 = vmatprep.subr.mxu0 0.0
    %1084 = vmatpush1.msra.mxu0 0.0
    %1085 = vmatprep.subr.mxu0 0.0
    %1086 = vmatpush1.msra.mxu0 0.0
    %1087 = vmatprep.mubr.f32.mxu0 0.0
    %1088 = vmatmul.mubr.f32.gmra.mrb[0].mxu0 %v1021
    %v1089 = vpop.f32.mrb[0].mxu0
    %v1090 = vadd.f32 %v1017, %v1089
    %v1091 = vpop.f32.mrb[0].mxu0
    %1092 = vdwg.mxu0
    %1093 = vst [vmem:[#allocation8] sm:$0xff] %v1090
    // Predicated region
    $region42: #{tpu_custom_call.1} parent=1 // pred_check
      _
    $region43: #{tpu_custom_call.1} parent=1 // pred_check_branch
      %1095 = sbr.rel (0) target = $region45
    $region44: #{tpu_custom_call.1} parent=1 // pred_region
      %s1097 = ssub.s32 128, 128
      %1098 = vsyncadd [#allocation5], %s1097
      %s1100 = sshll.u32 [#allocation8], 4
      %s1101 = int_to_ptr.vmem [resolvable:$true] %s1100
      %1103 = dma.vmem_to_hbm [thread:$0]  %s1101, 128, %s8, [#allocation5]
    $region45: #{tpu_custom_call.1} parent=1 // pred_fallthru
      _
    // Predicated region
    $region46: #{tpu_custom_call.1} parent=1 // pred_check
      _
    $region47: #{tpu_custom_call.1} parent=1 // pred_check_branch
      %1105 = sbr.rel (0) target = $region49
    $region48: #{tpu_custom_call.1} parent=1 // pred_region
      %1106 = dma.done [#allocation5], 128
    $region49: #{tpu_custom_call.1} parent=1 // pred_fallthru
      _
    %1107 = vsyncpa [#allocation4], 1
    %1108 = vsyncpa [#allocation7], 1
    %1109 = vsyncpa [#allocation5], 1

</llo_original>
